<compile_context>
chip_gen: v5e
topology: v5e:2x2
jax: 0.10.0
libtpu: 0.0.40
codegen_flags: <defaults>
</compile_context>

<pallas_src>
import jax
import jax.numpy as jnp
from jax.experimental import pallas as pl
from jax.experimental.pallas import tpu as pltpu


def _round_up(x, m):
    return (x + m - 1) // m * m


def _decoder_kernel(lm_ref, lc_ref, w1m_ref, b1m_ref, wom_ref, bom_ref,
                    wov_ref, bov_ref, mean_ref, var_ref):
    # Mean head: Linear(2*lod, 30) + Tanh, then Linear(30, out_dim).
    h = jnp.tanh(
        jnp.dot(lm_ref[...], w1m_ref[...], preferred_element_type=jnp.float32)
        + b1m_ref[...])
    mean_ref[...] = (
        jnp.dot(h, wom_ref[...], preferred_element_type=jnp.float32)
        + bom_ref[...])

    # Var head: Linear(45, out_dim) applied to latent_cov directly (as in the
    # reference forward), then elup1.
    log_var = (
        jnp.dot(lc_ref[...], wov_ref[...], preferred_element_type=jnp.float32)
        + bov_ref[...])
    var_ref[...] = jnp.where(log_var < 0.0, jnp.exp(log_var), log_var + 1.0)


def my_decoder_forward(latent_mean, latent_cov, params, out_dim, *, tb=4096):
    """latent_mean: [B, 2*lod], latent_cov: [B, 3*lod] (2*lod=30, 3*lod=45)."""
    B, d_mean = latent_mean.shape
    Bc, d_cov = latent_cov.shape
    assert B == Bc
    latent_mean = latent_mean.astype(jnp.float32)
    latent_cov = latent_cov.astype(jnp.float32)

    # Batch tile: multiple of 8, no larger than the (rounded-up) batch.
    TB = min(_round_up(max(tb, 8), 8), _round_up(B, 8))
    # Keep >= 2 grid steps when the batch permits, so the "parallel" batch axis
    # can shard across both TensorCores on v7x (harmless on v5e/v6e).
    if B > 16:
        TB = min(TB, _round_up(pl.cdiv(B, 2), 8))
    grid = (pl.cdiv(B, TB),)

    # VMEM budget: 4 streamed blocks (2 in / 2 out), each lane-padded to 128 in
    # VMEM and double-buffered, plus headroom for the tiny resident weights.
    vmem_bytes = int(min(max(2 * TB * 4 * 128 * 4 + (2 << 20), 16 << 20), 60 << 20))

    def resident(arr):
        return pl.BlockSpec(arr.shape, lambda i: (0, 0))

    mean_out, var_out = pl.pallas_call(
        _decoder_kernel,
        out_shape=(jax.ShapeDtypeStruct((B, out_dim), jnp.float32),
                   jax.ShapeDtypeStruct((B, out_dim), jnp.float32)),
        grid=grid,
        in_specs=[
            pl.BlockSpec((TB, d_mean), lambda i: (i, 0)),   # latent_mean (streamed)
            pl.BlockSpec((TB, d_cov), lambda i: (i, 0)),    # latent_cov  (streamed)
            resident(params["w1m"]),                        # resident weights/biases
            resident(params["b1m"]),
            resident(params["wom"]),
            resident(params["bom"]),
            resident(params["wov"]),
            resident(params["bov"]),
        ],
        out_specs=[
            pl.BlockSpec((TB, out_dim), lambda i: (i, 0)),  # mean
            pl.BlockSpec((TB, out_dim), lambda i: (i, 0)),  # var
        ],
        compiler_params=pltpu.CompilerParams(
            dimension_semantics=("parallel",),
            vmem_limit_bytes=vmem_bytes,
        ),
    )(latent_mean, latent_cov,
      params["w1m"], params["b1m"], params["wom"], params["bom"],
      params["wov"], params["bov"])
    return mean_out, var_out


def init_params(key, lod, out_dim):
    """Deterministic synthetic params; weights stored as [in, out]."""
    ks = jax.random.split(key, 8)

    def lin(kw, kb, fan_in, fan_out):
        bound = 1.0 / jnp.sqrt(fan_in)
        w = jax.random.uniform(kw, (fan_in, fan_out), jnp.float32, -bound, bound)
        b = jax.random.uniform(kb, (1, fan_out), jnp.float32, -bound, bound)
        return w, b

    w1m, b1m = lin(ks[0], ks[1], 2 * lod, 30)        # hidden mean Linear
    wom, bom = lin(ks[2], ks[3], 30, out_dim)        # out mean Linear
    wov, bov = lin(ks[4], ks[5], 3 * lod, out_dim)   # out var Linear (45 = 3*lod)
    return {"w1m": w1m, "b1m": b1m, "wom": wom, "bom": bom,
            "wov": wov, "bov": bov}


def reference_forward(latent_mean, latent_cov, params):
    h_mean = jnp.tanh(latent_mean @ params["w1m"] + params["b1m"])
    mean = h_mean @ params["wom"] + params["bom"]
    log_var = latent_cov @ params["wov"] + params["bov"]
    var = jnp.where(log_var < 0.0, jnp.exp(log_var), log_var + 1.0)
    return mean, var


if __name__ == "__main__":
    # For the reference module to be runnable, latent_cov's last dim (3*lod)
    # must equal 45 -> lod = 15.
    lod = 15
    out_dim = 8
    batch = 8

    key = jax.random.PRNGKey(0)
    k_param, k_lm, k_lc = jax.random.split(key, 3)

    params = init_params(k_param, lod, out_dim)

    latent_mean = jax.random.normal(k_lm, (batch, 2 * lod), jnp.float32)
    latent_cov = jax.random.normal(k_lc, (batch, 3 * lod), jnp.float32)

    mean, var = my_decoder_forward(latent_mean, latent_cov, params, out_dim)
    jax.block_until_ready((mean, var))

    mean_ref, var_ref = reference_forward(latent_mean, latent_cov, params)
    assert jnp.allclose(mean, mean_ref, atol=1e-5, rtol=1e-5)
    assert jnp.allclose(var, var_ref, atol=1e-5, rtol=1e-5)

    # Exercise the multi-step grid + ragged-last-tile path as well.
    batch2 = 200
    k_lm2, k_lc2 = jax.random.split(jax.random.PRNGKey(1), 2)
    lm2 = jax.random.normal(k_lm2, (batch2, 2 * lod), jnp.float32)
    lc2 = jax.random.normal(k_lc2, (batch2, 3 * lod), jnp.float32)
    mean2, var2 = my_decoder_forward(lm2, lc2, params, out_dim, tb=64)
    jax.block_until_ready((mean2, var2))
    mean2_ref, var2_ref = reference_forward(lm2, lc2, params)
    assert jnp.allclose(mean2, mean2_ref, atol=1e-5, rtol=1e-5)
    assert jnp.allclose(var2, var2_ref, atol=1e-5, rtol=1e-5)

    print("KERNEL_OK")
</pallas_src>

<mosaic_0001>
module attributes {stable_mosaic.version = 11 : i64} {
  func.func @_decoder_kernel(%arg0: i32, %arg1: memref<8x30xf32, #tpu.memory_space<vmem>>, %arg2: memref<8x45xf32, #tpu.memory_space<vmem>>, %arg3: memref<30x30xf32, #tpu.memory_space<vmem>>, %arg4: memref<1x30xf32, #tpu.memory_space<vmem>>, %arg5: memref<30x8xf32, #tpu.memory_space<vmem>>, %arg6: memref<1x8xf32, #tpu.memory_space<vmem>>, %arg7: memref<45x8xf32, #tpu.memory_space<vmem>>, %arg8: memref<1x8xf32, #tpu.memory_space<vmem>>, %arg9: memref<8x8xf32, #tpu.memory_space<vmem>>, %arg10: memref<8x8xf32, #tpu.memory_space<vmem>>) attributes {dimension_semantics = [#tpu.dimension_semantics<parallel>], iteration_bounds = array<i64: 1>, scalar_prefetch = 0 : i64, scratch_operands = 0 : i64, tpu.core_type = #tpu.core_type<tc>, window_params = [{transform_indices = @transform_0, window_bounds = array<i64: 8, 30>}, {transform_indices = @transform_1, window_bounds = array<i64: 8, 45>}, {pipeline_mode = #tpu.pipeline_mode<synchronous>, transform_indices = @transform_2, window_bounds = array<i64: 30, 30>}, {pipeline_mode = #tpu.pipeline_mode<synchronous>, transform_indices = @transform_3, window_bounds = array<i64: 1, 30>}, {pipeline_mode = #tpu.pipeline_mode<synchronous>, transform_indices = @transform_4, window_bounds = array<i64: 30, 8>}, {pipeline_mode = #tpu.pipeline_mode<synchronous>, transform_indices = @transform_5, window_bounds = array<i64: 1, 8>}, {pipeline_mode = #tpu.pipeline_mode<synchronous>, transform_indices = @transform_6, window_bounds = array<i64: 45, 8>}, {pipeline_mode = #tpu.pipeline_mode<synchronous>, transform_indices = @transform_7, window_bounds = array<i64: 1, 8>}, {transform_indices = @transform_8, window_bounds = array<i64: 8, 8>}, {transform_indices = @transform_9, window_bounds = array<i64: 8, 8>}]} {
    %c0 = arith.constant 0 : index
    %c0_0 = arith.constant 0 : index
    %0 = vector.load %arg1[%c0, %c0_0] : memref<8x30xf32, #tpu.memory_space<vmem>>, vector<8x30xf32>
    %c0_1 = arith.constant 0 : index
    %c0_2 = arith.constant 0 : index
    %1 = vector.load %arg3[%c0_1, %c0_2] : memref<30x30xf32, #tpu.memory_space<vmem>>, vector<30x30xf32>
    %cst = arith.constant dense<0.000000e+00> : vector<8x30xf32>
    %2 = tpu.matmul %0, %1, %cst {dimension_numbers = #tpu.dot_dimension_numbers<[1], [0], [0], [1], [0, 0, 1, 1], [], []>} : vector<8x30xf32>, vector<30x30xf32>, vector<8x30xf32> -> vector<8x30xf32>
    %c0_3 = arith.constant 0 : index
    %c0_4 = arith.constant 0 : index
    %3 = vector.load %arg4[%c0_3, %c0_4] : memref<1x30xf32, #tpu.memory_space<vmem>>, vector<1x30xf32>
    %4 = vector.broadcast %3 : vector<1x30xf32> to vector<8x30xf32>
    %5 = arith.addf %2, %4 : vector<8x30xf32>
    %6 = math.tanh %5 : vector<8x30xf32>
    %c0_5 = arith.constant 0 : index
    %c0_6 = arith.constant 0 : index
    %7 = vector.load %arg5[%c0_5, %c0_6] : memref<30x8xf32, #tpu.memory_space<vmem>>, vector<30x8xf32>
    %cst_7 = arith.constant dense<0.000000e+00> : vector<8x8xf32>
    %8 = tpu.matmul %6, %7, %cst_7 {dimension_numbers = #tpu.dot_dimension_numbers<[1], [0], [0], [1], [0, 0, 1, 1], [], []>} : vector<8x30xf32>, vector<30x8xf32>, vector<8x8xf32> -> vector<8x8xf32>
    %c0_8 = arith.constant 0 : index
    %c0_9 = arith.constant 0 : index
    %9 = vector.load %arg6[%c0_8, %c0_9] : memref<1x8xf32, #tpu.memory_space<vmem>>, vector<1x8xf32>
    %10 = vector.broadcast %9 : vector<1x8xf32> to vector<8x8xf32>
    %11 = arith.addf %8, %10 : vector<8x8xf32>
    %c0_10 = arith.constant 0 : index
    %c0_11 = arith.constant 0 : index
    %12 = vector.load %arg9[%c0_10, %c0_11] : memref<8x8xf32, #tpu.memory_space<vmem>>, vector<8x8xf32>
    tpu.vector_store %arg9[%c0_10, %c0_11], %11 {strides = array<i32>} : memref<8x8xf32, #tpu.memory_space<vmem>>, vector<8x8xf32>,
    %c0_12 = arith.constant 0 : index
    %c0_13 = arith.constant 0 : index
    %13 = vector.load %arg2[%c0_12, %c0_13] : memref<8x45xf32, #tpu.memory_space<vmem>>, vector<8x45xf32>
    %c0_14 = arith.constant 0 : index
    %c0_15 = arith.constant 0 : index
    %14 = vector.load %arg7[%c0_14, %c0_15] : memref<45x8xf32, #tpu.memory_space<vmem>>, vector<45x8xf32>
    %cst_16 = arith.constant dense<0.000000e+00> : vector<8x8xf32>
    %15 = tpu.matmul %13, %14, %cst_16 {dimension_numbers = #tpu.dot_dimension_numbers<[1], [0], [0], [1], [0, 0, 1, 1], [], []>} : vector<8x45xf32>, vector<45x8xf32>, vector<8x8xf32> -> vector<8x8xf32>
    %c0_17 = arith.constant 0 : index
    %c0_18 = arith.constant 0 : index
    %16 = vector.load %arg8[%c0_17, %c0_18] : memref<1x8xf32, #tpu.memory_space<vmem>>, vector<1x8xf32>
    %17 = vector.broadcast %16 : vector<1x8xf32> to vector<8x8xf32>
    %18 = arith.addf %15, %17 : vector<8x8xf32>
    %cst_19 = arith.constant 0.000000e+00 : f32
    %19 = vector.broadcast %cst_19 : f32 to vector<8x8xf32>
    %20 = arith.cmpf olt, %18, %19 : vector<8x8xf32>
    %21 = math.exp %18 : vector<8x8xf32>
    %cst_20 = arith.constant 1.000000e+00 : f32
    %22 = vector.broadcast %cst_20 : f32 to vector<8x8xf32>
    %23 = arith.addf %18, %22 : vector<8x8xf32>
    %24 = arith.select %20, %21, %23 : vector<8x8xi1>, vector<8x8xf32>
    %c0_21 = arith.constant 0 : index
    %c0_22 = arith.constant 0 : index
    %25 = vector.load %arg10[%c0_21, %c0_22] : memref<8x8xf32, #tpu.memory_space<vmem>>, vector<8x8xf32>
    tpu.vector_store %arg10[%c0_21, %c0_22], %24 {strides = array<i32>} : memref<8x8xf32, #tpu.memory_space<vmem>>, vector<8x8xf32>,
    return
  }
  func.func @transform_0(%arg0: i32) -> (i32, i32) {
    %c0_i32 = arith.constant 0 : i32
    %c0_i32_0 = arith.constant 0 : i32
    return %arg0, %c0_i32 : i32, i32
  }
  func.func @transform_1(%arg0: i32) -> (i32, i32) {
    %c0_i32 = arith.constant 0 : i32
    %c0_i32_0 = arith.constant 0 : i32
    return %arg0, %c0_i32 : i32, i32
  }
  func.func @transform_2(%arg0: i32) -> (i32, i32) {
    %c0_i32 = arith.constant 0 : i32
    %c0_i32_0 = arith.constant 0 : i32
    %c0_i32_1 = arith.constant 0 : i32
    return %c0_i32, %c0_i32_0 : i32, i32
  }
  func.func @transform_3(%arg0: i32) -> (i32, i32) {
    %c0_i32 = arith.constant 0 : i32
    %c0_i32_0 = arith.constant 0 : i32
    %c0_i32_1 = arith.constant 0 : i32
    return %c0_i32, %c0_i32_0 : i32, i32
  }
  func.func @transform_4(%arg0: i32) -> (i32, i32) {
    %c0_i32 = arith.constant 0 : i32
    %c0_i32_0 = arith.constant 0 : i32
    %c0_i32_1 = arith.constant 0 : i32
    return %c0_i32, %c0_i32_0 : i32, i32
  }
  func.func @transform_5(%arg0: i32) -> (i32, i32) {
    %c0_i32 = arith.constant 0 : i32
    %c0_i32_0 = arith.constant 0 : i32
    %c0_i32_1 = arith.constant 0 : i32
    return %c0_i32, %c0_i32_0 : i32, i32
  }
  func.func @transform_6(%arg0: i32) -> (i32, i32) {
    %c0_i32 = arith.constant 0 : i32
    %c0_i32_0 = arith.constant 0 : i32
    %c0_i32_1 = arith.constant 0 : i32
    return %c0_i32, %c0_i32_0 : i32, i32
  }
  func.func @transform_7(%arg0: i32) -> (i32, i32) {
    %c0_i32 = arith.constant 0 : i32
    %c0_i32_0 = arith.constant 0 : i32
    %c0_i32_1 = arith.constant 0 : i32
    return %c0_i32, %c0_i32_0 : i32, i32
  }
  func.func @transform_8(%arg0: i32) -> (i32, i32) {
    %c0_i32 = arith.constant 0 : i32
    %c0_i32_0 = arith.constant 0 : i32
    return %arg0, %c0_i32 : i32, i32
  }
  func.func @transform_9(%arg0: i32) -> (i32, i32) {
    %c0_i32 = arith.constant 0 : i32
    %c0_i32_0 = arith.constant 0 : i32
    return %arg0, %c0_i32 : i32, i32
  }
}

</mosaic_0001>

<llo_original>
// kernel: tpu_custom_call.1
$region0: #{tpu_custom_call.1}
  #allocation0 [shape = 'u32[]', space=smem, size = 0x4, offset = 0x4, fixed_abs, tag = 'smem constant byte address 0x4 - core index']
  #allocation1 [shape = 'u32[72,128]{1,0:T(1,128)}', space=vmem, size = 0x9000, scoped, tag = 'internal scratch']
  %s0 = inlined_call_operand.vmem [shape: f32[8,30], index: 0, kind: input, shape index: {}]
  %s1 = inlined_call_operand.vmem [shape: f32[8,45], index: 1, kind: input, shape index: {}]
  %s2 = inlined_call_operand.vmem [shape: f32[30,30], index: 2, kind: input, shape index: {}]
  %s3 = inlined_call_operand.vmem [shape: f32[1,30], index: 3, kind: input, shape index: {}]
  %s4 = inlined_call_operand.vmem [shape: f32[30,8], index: 4, kind: input, shape index: {}]
  %s5 = inlined_call_operand.vmem [shape: f32[1,8], index: 5, kind: input, shape index: {}]
  %s6 = inlined_call_operand.vmem [shape: f32[45,8], index: 6, kind: input, shape index: {}]
  %s7 = inlined_call_operand.vmem [shape: f32[1,8], index: 7, kind: input, shape index: {}]
  %s8 = inlined_call_operand.hbm [shape: f32[8,8], index: 8, kind: output, shape index: {0}]
  %s9 = inlined_call_operand.hbm [shape: f32[8,8], index: 9, kind: output, shape index: {1}]
  %10 = xla_tuple %s8, %s9
  %s11 = sld [smem:[#allocation0]]
  $region50: #{tpu_custom_call.1} parent=0
    _
  %s13 = ssub.s32 1, %s11
  %s14 = scalar_select 0, %s13, %s11
  $region1: #{tpu_custom_call.1} parent=0
    #allocation2 [shape = 'u8[4096]{0}', space=vmem, size = 0x1000, scoped, tag = 'output window, operand 0, single buffered']
    #allocation3 [shape = 's32[1]{0}', space=sflag, size = 0x4, scoped, tag = 'scoped memory for tpu_custom_call.1']
    #allocation4 [shape = 'u8[4096]{0}', space=vmem, size = 0x1000, scoped, tag = 'output window, operand 1, single buffered']
    #allocation5 [shape = 's32[1]{0}', space=sflag, size = 0x4, scoped, tag = 'scoped memory for tpu_custom_call.1']
    %15 = vsyncpa [#allocation3], 0
    %16 = vsyncpa [#allocation5], 0
    // Predicated region
    $region2: #{tpu_custom_call.1} parent=1 // pred_check
      _
    $region3: #{tpu_custom_call.1} parent=1 // pred_check_branch
      %18 = sbr.rel (0) target = $region5
    $region4: #{tpu_custom_call.1} parent=1 // pred_region
      _
    $region5: #{tpu_custom_call.1} parent=1 // pred_fallthru
      _
    // Predicated region
    $region6: #{tpu_custom_call.1} parent=1 // pred_check
      _
    $region7: #{tpu_custom_call.1} parent=1 // pred_check_branch
      %20 = sbr.rel (0) target = $region9
    $region8: #{tpu_custom_call.1} parent=1 // pred_region
      _
    $region9: #{tpu_custom_call.1} parent=1 // pred_fallthru
      _
    // Predicated region
    $region10: #{tpu_custom_call.1} parent=1 // pred_check
      _
    $region11: #{tpu_custom_call.1} parent=1 // pred_check_branch
      %22 = sbr.rel (0) target = $region13
    $region12: #{tpu_custom_call.1} parent=1 // pred_region
      _
    $region13: #{tpu_custom_call.1} parent=1 // pred_fallthru
      _
    // Predicated region
    $region14: #{tpu_custom_call.1} parent=1 // pred_check
      _
    $region15: #{tpu_custom_call.1} parent=1 // pred_check_branch
      %24 = sbr.rel (0) target = $region17
    $region16: #{tpu_custom_call.1} parent=1 // pred_region
      _
    $region17: #{tpu_custom_call.1} parent=1 // pred_fallthru
      _
    // Predicated region
    $region18: #{tpu_custom_call.1} parent=1 // pred_check
      _
    $region19: #{tpu_custom_call.1} parent=1 // pred_check_branch
      %26 = sbr.rel (0) target = $region21
    $region20: #{tpu_custom_call.1} parent=1 // pred_region
      _
    $region21: #{tpu_custom_call.1} parent=1 // pred_fallthru
      _
    // Predicated region
    $region22: #{tpu_custom_call.1} parent=1 // pred_check
      _
    $region23: #{tpu_custom_call.1} parent=1 // pred_check_branch
      %28 = sbr.rel (0) target = $region25
    $region24: #{tpu_custom_call.1} parent=1 // pred_region
      _
    $region25: #{tpu_custom_call.1} parent=1 // pred_fallthru
      _
    // Predicated region
    $region26: #{tpu_custom_call.1} parent=1 // pred_check
      _
    $region27: #{tpu_custom_call.1} parent=1 // pred_check_branch
      %30 = sbr.rel (0) target = $region29
    $region28: #{tpu_custom_call.1} parent=1 // pred_region
      _
    $region29: #{tpu_custom_call.1} parent=1 // pred_fallthru
      _
    // Predicated region
    $region30: #{tpu_custom_call.1} parent=1 // pred_check
      _
    $region31: #{tpu_custom_call.1} parent=1 // pred_check_branch
      %32 = sbr.rel (0) target = $region33
    $region32: #{tpu_custom_call.1} parent=1 // pred_region
      _
    $region33: #{tpu_custom_call.1} parent=1 // pred_fallthru
      _
    %v33 = vld [vmem:[%s0] sm:$0xff]
    %v34 = vld [vmem:[%s2] sm:$0xff]
    %v35 = vld [vmem:[%s2 + $0x8] sm:$0xff]
    %v36 = vld [vmem:[%s2 + $0x10] sm:$0xff]
    %v37 = vld [vmem:[%s2 + $0x18] sm:$0x3f]
    %v38 = vld [vmem:[%s3] sm:$0x1]
    %v40 = vperm.slane %v38, 0
    %vm42 = vcmask 244736
    %v44 = vsel %vm42, %v33, 0
    %vm46 = vcmask 1045504
    %v48 = vsel %vm46, %v37, 0
    %50 = vmatpush.msra.mxu0 0.0
    %51 = vmatpush.msra.mxu0 0.0
    %52 = vmatpush.msra.mxu0 0.0
    %53 = vmatpush.msra.mxu0 0.0
    %54 = vmatpush.msra.mxu0 0.0
    %55 = vmatpush.msra.mxu0 0.0
    %56 = vmatpush.msra.mxu0 0.0
    %57 = vmatpush.msra.mxu0 0.0
    %58 = vmatpush.msra.mxu0 0.0
    %59 = vmatpush.msra.mxu0 0.0
    %60 = vmatpush.msra.mxu0 0.0
    %61 = vmatpush.msra.mxu0 0.0
    %62 = vmatpush.msra.mxu0 %v48
    %63 = vmatpush.msra.mxu0 %v36
    %64 = vmatpush.msra.mxu0 %v35
    %65 = vmatpush.msra.mxu0 %v34
    %66 = vmatmul.f32.gmra.mxu0 %v44
    %v67 = vpop.f32.mrf.mxu0
    %v68 = vadd.f32 %v40, %v67
    %69 = vdwg.mxu0
    %v70 = vtanh.pop %v68
    %v71 = vld [vmem:[%s4] sm:$0xff]
    %v72 = vld [vmem:[%s4 + $0x8] sm:$0xff]
    %v73 = vld [vmem:[%s4 + $0x10] sm:$0xff]
    %v74 = vld [vmem:[%s4 + $0x18] sm:$0x3f]
    %v75 = vld [vmem:[%s5] sm:$0x1]
    %v77 = vperm.slane %v75, 0
    %v80 = vsel %vm42, %v70, 0
    %v83 = vsel %vm46, %v74, 0
    %85 = vmatpush.msra.mxu0 0.0
    %86 = vmatpush.msra.mxu0 0.0
    %87 = vmatpush.msra.mxu0 0.0
    %88 = vmatpush.msra.mxu0 0.0
    %89 = vmatpush.msra.mxu0 0.0
    %90 = vmatpush.msra.mxu0 0.0
    %91 = vmatpush.msra.mxu0 0.0
    %92 = vmatpush.msra.mxu0 0.0
    %93 = vmatpush.msra.mxu0 0.0
    %94 = vmatpush.msra.mxu0 0.0
    %95 = vmatpush.msra.mxu0 0.0
    %96 = vmatpush.msra.mxu0 0.0
    %97 = vmatpush.msra.mxu0 %v83
    %98 = vmatpush.msra.mxu0 %v73
    %99 = vmatpush.msra.mxu0 %v72
    %100 = vmatpush.msra.mxu0 %v71
    %101 = vmatmul.f32.gmra.mxu0 %v80
    %v102 = vpop.f32.mrf.mxu0
    %v103 = vadd.f32 %v77, %v102
    %104 = vdwg.mxu0
    %vm105 = vcmask 64512
    %106 = vst.msk [vmem:[#allocation2] sm:$0xff] %vm105, %v103
    %v107 = vld [vmem:[%s1] sm:$0xff]
    %v108 = vld [vmem:[%s6] sm:$0xff]
    %v109 = vld [vmem:[%s6 + $0x8] sm:$0xff]
    %v110 = vld [vmem:[%s6 + $0x10] sm:$0xff]
    %v111 = vld [vmem:[%s6 + $0x18] sm:$0xff]
    %v112 = vld [vmem:[%s6 + $0x20] sm:$0xff]
    %v113 = vld [vmem:[%s6 + $0x28] sm:$0x1f]
    %v114 = vld [vmem:[%s7] sm:$0x1]
    %v116 = vperm.slane %v114, 0
    %vm118 = vcmask 367616
    %v120 = vsel %vm118, %v107, 0
    %vm122 = vcmask 1044480
    %v124 = vsel %vm122, %v113, 0
    %126 = vmatpush.msra.mxu0 0.0
    %127 = vmatpush.msra.mxu0 0.0
    %128 = vmatpush.msra.mxu0 0.0
    %129 = vmatpush.msra.mxu0 0.0
    %130 = vmatpush.msra.mxu0 0.0
    %131 = vmatpush.msra.mxu0 0.0
    %132 = vmatpush.msra.mxu0 0.0
    %133 = vmatpush.msra.mxu0 0.0
    %134 = vmatpush.msra.mxu0 0.0
    %135 = vmatpush.msra.mxu0 0.0
    %136 = vmatpush.msra.mxu0 %v124
    %137 = vmatpush.msra.mxu0 %v112
    %138 = vmatpush.msra.mxu0 %v111
    %139 = vmatpush.msra.mxu0 %v110
    %140 = vmatpush.msra.mxu0 %v109
    %141 = vmatpush.msra.mxu0 %v108
    %142 = vmatmul.f32.gmra.mxu0 %v120
    %v143 = vpop.f32.mrf.mxu0
    %v144 = vadd.f32 %v116, %v143
    %145 = vdwg.mxu0
    %vm146 = vcmp.lt.f32.partialorder %v144, 0.0
    %v147 = vmul.f32 %v144, 1.442695
    %v148 = vpow.pop %v147
    %v149 = vadd.f32 %v144, 1.0
    %v150 = vsel %vm146, %v148, %v149
    %151 = vst.msk [vmem:[#allocation4] sm:$0xff] %vm105, %v150
    // Predicated region
    $region34: #{tpu_custom_call.1} parent=1 // pred_check
      _
    $region35: #{tpu_custom_call.1} parent=1 // pred_check_branch
      %153 = sbr.rel (0) target = $region37
    $region36: #{tpu_custom_call.1} parent=1 // pred_region
      %155 = vsyncadd [#allocation3], 0
      %s157 = sshll.u32 [#allocation2], 4
      %s158 = int_to_ptr.vmem [resolvable:$true] %s157
      %s159 = sshll.u32 %s8, 4
      %s160 = int_to_ptr.hbm [resolvable:$true] %s159
      %162 = dma.vmem_to_hbm [thread:$0]  %s158, 128, %s160, [#allocation3]
    $region37: #{tpu_custom_call.1} parent=1 // pred_fallthru
      _
    // Predicated region
    $region38: #{tpu_custom_call.1} parent=1 // pred_check
      _
    $region39: #{tpu_custom_call.1} parent=1 // pred_check_branch
      %164 = sbr.rel (0) target = $region41
    $region40: #{tpu_custom_call.1} parent=1 // pred_region
      %166 = vsyncadd [#allocation5], 0
      %s168 = sshll.u32 [#allocation4], 4
      %s169 = int_to_ptr.vmem [resolvable:$true] %s168
      %s170 = sshll.u32 %s9, 4
      %s171 = int_to_ptr.hbm [resolvable:$true] %s170
      %173 = dma.vmem_to_hbm [thread:$0]  %s169, 128, %s171, [#allocation5]
    $region41: #{tpu_custom_call.1} parent=1 // pred_fallthru
      _
    // Predicated region
    $region42: #{tpu_custom_call.1} parent=1 // pred_check
      _
    $region43: #{tpu_custom_call.1} parent=1 // pred_check_branch
      %175 = sbr.rel (0) target = $region45
    $region44: #{tpu_custom_call.1} parent=1 // pred_region
      %177 = dma.done [#allocation3], 128
    $region45: #{tpu_custom_call.1} parent=1 // pred_fallthru
      _
    // Predicated region
    $region46: #{tpu_custom_call.1} parent=1 // pred_check
      _
    $region47: #{tpu_custom_call.1} parent=1 // pred_check_branch
      %179 = sbr.rel (0) target = $region49
    $region48: #{tpu_custom_call.1} parent=1 // pred_region
      %181 = dma.done [#allocation5], 128
    $region49: #{tpu_custom_call.1} parent=1 // pred_fallthru
      _
    %182 = vsyncpa [#allocation3], 1
    %183 = vsyncpa [#allocation5], 1

</llo_original>
